<compile_context>
chip_gen: v7x
topology: tpu7x:2x2x1
jax: 0.10.0
libtpu: 0.0.40
codegen_flags: <defaults>
</compile_context>

<pallas_src>
import functools

import jax
import jax.numpy as jnp
from jax import lax
from jax.experimental import pallas as pl
from jax.experimental.pallas import tpu as pltpu


# --------------------------------------------------------------------------
# Kernel 1: concat + row L2-normalize (clamped), plus the per-row positive
# dot pos_i = zn1_i . zn2_i and the analytic diagonal diag_i = ||zn_i||^2.
# --------------------------------------------------------------------------
def _normalize_kernel(z1_ref, z2_ref, zn_ref, pos_ref, diag_ref, *, b):
    z1 = z1_ref[...].astype(jnp.float32)
    z2 = z2_ref[...].astype(jnp.float32)

    ss1 = jnp.sum(z1 * z1, axis=-1, keepdims=True)          # (b, 1)
    ss2 = jnp.sum(z2 * z2, axis=-1, keepdims=True)
    # z / clamp(||z||, 1e-5)  ==  z * rsqrt(max(sumsq, 1e-10))
    inv1 = lax.rsqrt(jnp.maximum(ss1, 1e-10))
    inv2 = lax.rsqrt(jnp.maximum(ss2, 1e-10))
    zn1 = z1 * inv1
    zn2 = z2 * inv2

    zn_ref[:b, :] = zn1
    zn_ref[b:, :] = zn2

    # Positive of row i (< b) is column i + b, of row b + j is column j; both
    # equal zn1_i . zn2_i, so the (b,1) vector is duplicated for both halves.
    pos = jnp.sum(zn1 * zn2, axis=-1, keepdims=True)         # (b, 1)
    pos_ref[:b, :] = pos
    pos_ref[b:, :] = pos

    # Analytic s_ii = ||zn_i||^2 = sumsq * inv^2 (1 unless the clamp fired).
    diag_ref[:b, :] = ss1 * inv1 * inv1
    diag_ref[b:, :] = ss2 * inv2 * inv2


# --------------------------------------------------------------------------
# Kernel 2: flash-style tiled Gram matrix + running per-row denominator.
# grid = (row blocks [parallel], column blocks [arbitrary]).
# --------------------------------------------------------------------------
def _gram_loss_kernel(zn_ref, pos_ref, diag_ref, loss_ref, denom_acc,
                      *, block_m, block_n, inv_sqrt_b, mxu_dtype):
    i = pl.program_id(0)
    j = pl.program_id(1)
    nj = pl.num_programs(1)

    @pl.when(j == 0)
    def _init():
        denom_acc[...] = jnp.zeros_like(denom_acc)

    row0 = pl.multiple_of(i * block_m, block_m)
    col0 = pl.multiple_of(j * block_n, block_n)
    zrow = zn_ref[pl.ds(row0, block_m), :]                    # (Tm, E)
    zcol = zn_ref[pl.ds(col0, block_n), :]                    # (Tn, E)
    if mxu_dtype is not None:
        zrow = zrow.astype(mxu_dtype)
        zcol = zcol.astype(mxu_dtype)

    # NT contraction (contract the feature dims) -- same pattern as the
    # flash-attention q.k^T einsum; Mosaic feeds the transposed RHS to the MXU.
    s = lax.dot_general(
        zrow, zcol,
        dimension_numbers=(((1,), (1,)), ((), ())),
        preferred_element_type=jnp.float32,
    )                                                          # (Tm, Tn)
    # s is a cosine similarity in [-1, 1] scaled by 1/sqrt(B): no max-subtract
    # needed before exp (documented invariant).
    denom_acc[...] += jnp.sum(jnp.exp(s * inv_sqrt_b), axis=-1, keepdims=True)

    @pl.when(j == nj - 1)
    def _finalize():
        # Remove the diagonal term analytically, then the exp/log of the
        # numerator cancels: loss_i = log(denom_i) - s[i, pos_i]/sqrt(B).
        denom = denom_acc[...] - jnp.exp(diag_ref[...] * inv_sqrt_b)
        loss_ref[...] = jnp.log(denom) - pos_ref[...] * inv_sqrt_b


# --------------------------------------------------------------------------
# Wrapper
# --------------------------------------------------------------------------
def _largest_divisor(n, cap, mult):
    best = 0
    d = mult
    while d <= min(n, cap):
        if n % d == 0:
            best = d
        d += mult
    return best


def _pick_tile(n, cap):
    for mult in (128, 8):
        t = _largest_divisor(n, cap, mult)
        if t:
            return t
    return n


def info_nce_loss(z1, z2, *, block_m=None, block_n=None, use_bf16_matmul=False):
    """Pallas implementation of infoNCELoss.forward(z1, z2)."""
    assert z1.shape == z2.shape, "z1 and z2 must have identical (bsz, enc_dim)"
    b, e = z1.shape
    B = 2 * b
    inv_sqrt_b = 1.0 / (B ** 0.5)

    # Pad the feature dim to a lane multiple; zero features change neither
    # norms nor dot products.
    if e % 128 != 0:
        pad = 128 - e % 128
        z1 = jnp.pad(z1, ((0, 0), (0, pad)))
        z2 = jnp.pad(z2, ((0, 0), (0, pad)))
        e = e + pad

    # --- Kernel 1: normalize + positives + analytic diagonal ---------------
    zn, pos, diag = pl.pallas_call(
        functools.partial(_normalize_kernel, b=b),
        out_shape=(
            jax.ShapeDtypeStruct((B, e), jnp.float32),
            jax.ShapeDtypeStruct((B, 1), jnp.float32),
            jax.ShapeDtypeStruct((B, 1), jnp.float32),
        ),
        in_specs=[
            pl.BlockSpec((b, e), lambda: (0, 0)),
            pl.BlockSpec((b, e), lambda: (0, 0)),
        ],
        out_specs=(
            pl.BlockSpec((B, e), lambda: (0, 0)),
            pl.BlockSpec((B, 1), lambda: (0, 0)),
            pl.BlockSpec((B, 1), lambda: (0, 0)),
        ),
    )(z1, z2)

    # --- Kernel 2: tiled Gram / exp / row denominators ---------------------
    bm = block_m if block_m is not None else _pick_tile(B, 256)
    bn = block_n if block_n is not None else _pick_tile(B, 512)
    assert B % bm == 0 and B % bn == 0, "tile sizes must divide B = 2*bsz"
    grid = (B // bm, B // bn)

    mxu_dtype = jnp.bfloat16 if use_bf16_matmul else None

    # Working-set estimate: resident zn (+ buffering), (Tm,Tn) s/exp tiles,
    # small per-row vectors.  Raise the scoped VMEM limit accordingly.
    vmem_est = 2 * B * e * 4 + 6 * bm * bn * 4 + 16 * bm * 4 + (2 << 20)
    vmem_limit = int(min(max(vmem_est, 16 << 20), 64 << 20))

    loss_rows = pl.pallas_call(
        functools.partial(
            _gram_loss_kernel,
            block_m=bm, block_n=bn,
            inv_sqrt_b=inv_sqrt_b, mxu_dtype=mxu_dtype,
        ),
        out_shape=jax.ShapeDtypeStruct((B, 1), jnp.float32),
        grid_spec=pltpu.PrefetchScalarGridSpec(
            num_scalar_prefetch=0,
            grid=grid,
            in_specs=[
                pl.BlockSpec((B, e), lambda i, j: (0, 0)),    # zn: VMEM-resident
                pl.BlockSpec((bm, 1), lambda i, j: (i, 0)),   # pos (row block)
                pl.BlockSpec((bm, 1), lambda i, j: (i, 0)),   # diag (row block)
            ],
            out_specs=pl.BlockSpec((bm, 1), lambda i, j: (i, 0)),
            scratch_shapes=[pltpu.VMEM((bm, 1), jnp.float32)],
        ),
        compiler_params=pltpu.CompilerParams(
            dimension_semantics=("parallel", "arbitrary"),
            vmem_limit_bytes=vmem_limit,
        ),
    )(zn, pos, diag)

    return jnp.sum(loss_rows) * (1.0 / B)


# --------------------------------------------------------------------------
# Pure-JAX reference (transcribes the PyTorch forward, incl. the flatten trick)
# --------------------------------------------------------------------------
def _reference(z1, z2):
    z = jnp.concatenate([z1, z2], axis=0)
    z = z / jnp.maximum(jnp.linalg.norm(z, axis=-1, keepdims=True), 1e-5)
    s = z @ z.T
    B = s.shape[0]
    s_nd = s.flatten()[1:].reshape(B - 1, B + 1)[:, :-1].reshape(B, B - 1)
    exp_s = jnp.exp(s_nd / (B ** 0.5))
    out = -jnp.log(exp_s / jnp.sum(exp_s, axis=1, keepdims=True))
    b = B // 2
    L = jnp.sum(jnp.diag(out[:b, b - 1:]) + jnp.diag(out[b:, :b]))
    return L / B


if __name__ == "__main__":
    key = jax.random.PRNGKey(0)
    k1, k2 = jax.random.split(key)

    # Small, tile-aligned demo: B = 256 rows, E = 128 lanes, grid = (2, 2).
    bsz, enc_dim = 128, 128
    z1 = jax.random.normal(k1, (bsz, enc_dim), dtype=jnp.float32)
    z2 = jax.random.normal(k2, (bsz, enc_dim), dtype=jnp.float32)

    out = jax.block_until_ready(info_nce_loss(z1, z2, block_m=128, block_n=128))
    ref = jax.block_until_ready(_reference(z1, z2))
    assert jnp.allclose(out, ref, rtol=1e-4, atol=1e-5), (out, ref)

    print("KERNEL_OK")
</pallas_src>

<mosaic_0001>
module attributes {stable_mosaic.version = 11 : i64} {
  func.func @_normalize_kernel(%arg0: memref<128x128xf32, #tpu.memory_space<vmem>>, %arg1: memref<128x128xf32, #tpu.memory_space<vmem>>, %arg2: memref<256x128xf32, #tpu.memory_space<vmem>>, %arg3: memref<256x1xf32, #tpu.memory_space<vmem>>, %arg4: memref<256x1xf32, #tpu.memory_space<vmem>>) attributes {dimension_semantics = [], scalar_prefetch = 0 : i64, scratch_operands = 0 : i64, tpu.core_type = #tpu.core_type<tc>} {
    %c0 = arith.constant 0 : index
    %c0_0 = arith.constant 0 : index
    %0 = vector.load %arg0[%c0, %c0_0] : memref<128x128xf32, #tpu.memory_space<vmem>>, vector<128x128xf32>
    %c0_1 = arith.constant 0 : index
    %c0_2 = arith.constant 0 : index
    %1 = vector.load %arg1[%c0_1, %c0_2] : memref<128x128xf32, #tpu.memory_space<vmem>>, vector<128x128xf32>
    %2 = arith.mulf %0, %0 : vector<128x128xf32>
    %cst = arith.constant dense<0.000000e+00> : vector<128xf32>
    %3 = vector.multi_reduction <add>, %2, %cst [1] : vector<128x128xf32> to vector<128xf32>
    %4 = vector.shape_cast %3 : vector<128xf32> to vector<128x1xf32>
    %5 = arith.mulf %1, %1 : vector<128x128xf32>
    %cst_3 = arith.constant dense<0.000000e+00> : vector<128xf32>
    %6 = vector.multi_reduction <add>, %5, %cst_3 [1] : vector<128x128xf32> to vector<128xf32>
    %7 = vector.shape_cast %6 : vector<128xf32> to vector<128x1xf32>
    %cst_4 = arith.constant 1.000000e-10 : f32
    %8 = vector.broadcast %cst_4 : f32 to vector<128x1xf32>
    %9 = arith.maximumf %4, %8 : vector<128x1xf32>
    %10 = math.rsqrt %9 : vector<128x1xf32>
    %cst_5 = arith.constant 1.000000e-10 : f32
    %11 = vector.broadcast %cst_5 : f32 to vector<128x1xf32>
    %12 = arith.maximumf %7, %11 : vector<128x1xf32>
    %13 = math.rsqrt %12 : vector<128x1xf32>
    %14 = vector.broadcast %10 : vector<128x1xf32> to vector<128x128xf32>
    %15 = arith.mulf %0, %14 : vector<128x128xf32>
    %16 = vector.broadcast %13 : vector<128x1xf32> to vector<128x128xf32>
    %17 = arith.mulf %1, %16 : vector<128x128xf32>
    %c0_6 = arith.constant 0 : index
    %c0_7 = arith.constant 0 : index
    %18 = vector.load %arg2[%c0_6, %c0_7] : memref<256x128xf32, #tpu.memory_space<vmem>>, vector<128x128xf32>
    tpu.vector_store %arg2[%c0_6, %c0_7], %15 {strides = array<i32>} : memref<256x128xf32, #tpu.memory_space<vmem>>, vector<128x128xf32>,
    %c128 = arith.constant 128 : index
    %c0_8 = arith.constant 0 : index
    %19 = vector.load %arg2[%c128, %c0_8] : memref<256x128xf32, #tpu.memory_space<vmem>>, vector<128x128xf32>
    tpu.vector_store %arg2[%c128, %c0_8], %17 {strides = array<i32>} : memref<256x128xf32, #tpu.memory_space<vmem>>, vector<128x128xf32>,
    %20 = arith.mulf %15, %17 : vector<128x128xf32>
    %cst_9 = arith.constant dense<0.000000e+00> : vector<128xf32>
    %21 = vector.multi_reduction <add>, %20, %cst_9 [1] : vector<128x128xf32> to vector<128xf32>
    %22 = vector.shape_cast %21 : vector<128xf32> to vector<128x1xf32>
    %c0_10 = arith.constant 0 : index
    %c0_11 = arith.constant 0 : index
    %23 = vector.load %arg3[%c0_10, %c0_11] : memref<256x1xf32, #tpu.memory_space<vmem>>, vector<128x1xf32>
    tpu.vector_store %arg3[%c0_10, %c0_11], %22 {strides = array<i32>} : memref<256x1xf32, #tpu.memory_space<vmem>>, vector<128x1xf32>,
    %c128_12 = arith.constant 128 : index
    %c0_13 = arith.constant 0 : index
    %24 = vector.load %arg3[%c128_12, %c0_13] : memref<256x1xf32, #tpu.memory_space<vmem>>, vector<128x1xf32>
    tpu.vector_store %arg3[%c128_12, %c0_13], %22 {strides = array<i32>} : memref<256x1xf32, #tpu.memory_space<vmem>>, vector<128x1xf32>,
    %25 = arith.mulf %4, %10 : vector<128x1xf32>
    %26 = arith.mulf %25, %10 : vector<128x1xf32>
    %c0_14 = arith.constant 0 : index
    %c0_15 = arith.constant 0 : index
    %27 = vector.load %arg4[%c0_14, %c0_15] : memref<256x1xf32, #tpu.memory_space<vmem>>, vector<128x1xf32>
    tpu.vector_store %arg4[%c0_14, %c0_15], %26 {strides = array<i32>} : memref<256x1xf32, #tpu.memory_space<vmem>>, vector<128x1xf32>,
    %28 = arith.mulf %7, %13 : vector<128x1xf32>
    %29 = arith.mulf %28, %13 : vector<128x1xf32>
    %c128_16 = arith.constant 128 : index
    %c0_17 = arith.constant 0 : index
    %30 = vector.load %arg4[%c128_16, %c0_17] : memref<256x1xf32, #tpu.memory_space<vmem>>, vector<128x1xf32>
    tpu.vector_store %arg4[%c128_16, %c0_17], %29 {strides = array<i32>} : memref<256x1xf32, #tpu.memory_space<vmem>>, vector<128x1xf32>,
    return
  }
}

</mosaic_0001>

<llo_original>
// kernel: tpu_custom_call.1
$region0: #{tpu_custom_call.1}
  #allocation0 [shape = 'u32[]', space=smem, size = 0x4, offset = 0x4, fixed_abs, tag = 'smem constant byte address 0x4 - core index']
  #allocation1 [shape = 'u32[144,128]{1,0:T(1,128)}', space=vmem, size = 0x12000, scoped, tag = 'internal scratch']
  %s0 = inlined_call_operand.hbm [shape: f32[128,128], index: 0, kind: input, shape index: {}]
  %s1 = inlined_call_operand.hbm [shape: f32[128,128], index: 1, kind: input, shape index: {}]
  %s2 = inlined_call_operand.hbm [shape: f32[256,128], index: 2, kind: output, shape index: {0}]
  %s3 = inlined_call_operand.vmem [shape: f32[256,1], index: 3, kind: output, shape index: {1}]
  %s4 = inlined_call_operand.vmem [shape: f32[256,1], index: 4, kind: output, shape index: {2}]
  %5 = xla_tuple %s2, %s3, %s4
  %s6 = sld [smem:[#allocation0]]
  $region42: #{tpu_custom_call.1} parent=0
    _
  %s8 = ssub.s32 1, %s6
  %s9 = scalar_select 0, %s8, %s6
  $region1: #{tpu_custom_call.1} parent=0
    #allocation2 [shape = 'u8[65536]{0}', space=vmem, size = 0x10000, scoped, tag = 'input window, operand 0, single buffered']
    #allocation3 [shape = 's32[1]{0}', space=sflag, size = 0x4, scoped, tag = 'scoped memory for tpu_custom_call.1']
    #allocation4 [shape = 's32[1]{0}', space=sflag, size = 0x4, scoped, tag = 'scoped memory for tpu_custom_call.1']
    #allocation5 [shape = 'u8[65536]{0}', space=vmem, size = 0x10000, scoped, tag = 'input window, operand 1, single buffered']
    #allocation6 [shape = 's32[1]{0}', space=sflag, size = 0x4, scoped, tag = 'scoped memory for tpu_custom_call.1']
    #allocation7 [shape = 'u8[131072]{0}', space=vmem, size = 0x20000, scoped, tag = 'output window, operand 0, single buffered']
    %10 = vsyncpa [#allocation3], 0
    %11 = vsyncpa [#allocation6], 0
    %12 = vsyncpa [#allocation4], 0
    // Predicated region
    $region2: #{tpu_custom_call.1} parent=1 // pred_check
      _
    $region3: #{tpu_custom_call.1} parent=1 // pred_check_branch
      %14 = sbr.rel (0) target = $region5
    $region4: #{tpu_custom_call.1} parent=1 // pred_region
      %s16 = ssub.s32 2048, 2048
      %17 = vsyncadd [#allocation3], %s16
      %s18 = sshll.u32 [#allocation2], 4
      %s19 = int_to_ptr.vmem [resolvable:$true] %s18
      %24 = dma.hbm_to_vmem [thread:$0]  %s0, 2048, %s19, [#allocation3], 128, 128, 8
    $region5: #{tpu_custom_call.1} parent=1 // pred_fallthru
      _
    // Predicated region
    $region6: #{tpu_custom_call.1} parent=1 // pred_check
      _
    $region7: #{tpu_custom_call.1} parent=1 // pred_check_branch
      %26 = sbr.rel (0) target = $region9
    $region8: #{tpu_custom_call.1} parent=1 // pred_region
      %s28 = ssub.s32 2048, 2048
      %29 = vsyncadd [#allocation6], %s28
      %s30 = sshll.u32 [#allocation5], 4
      %s31 = int_to_ptr.vmem [resolvable:$true] %s30
      %36 = dma.hbm_to_vmem [thread:$0]  %s1, 2048, %s31, [#allocation6], 128, 128, 8
    $region9: #{tpu_custom_call.1} parent=1 // pred_fallthru
      _
    // Predicated region
    $region10: #{tpu_custom_call.1} parent=1 // pred_check
      _
    $region11: #{tpu_custom_call.1} parent=1 // pred_check_branch
      %38 = sbr.rel (0) target = $region13
    $region12: #{tpu_custom_call.1} parent=1 // pred_region
      %39 = dma.done [#allocation3], 2048
    $region13: #{tpu_custom_call.1} parent=1 // pred_fallthru
      _
    // Predicated region
    $region14: #{tpu_custom_call.1} parent=1 // pred_check
      _
    $region15: #{tpu_custom_call.1} parent=1 // pred_check_branch
      %41 = sbr.rel (0) target = $region17
    $region16: #{tpu_custom_call.1} parent=1 // pred_region
      %42 = dma.done [#allocation6], 2048
    $region17: #{tpu_custom_call.1} parent=1 // pred_fallthru
      _
    %v43 = vld [vmem:[#allocation2] sm:$0xff]
    %v44 = vld [vmem:[#allocation2 + $0x8] sm:$0xff]
    %v45 = vld [vmem:[#allocation2 + $0x10] sm:$0xff]
    %v46 = vld [vmem:[#allocation2 + $0x18] sm:$0xff]
    %v47 = vld [vmem:[#allocation2 + $0x20] sm:$0xff]
    %v48 = vld [vmem:[#allocation2 + $0x28] sm:$0xff]
    %v49 = vld [vmem:[#allocation2 + $0x30] sm:$0xff]
    %v50 = vld [vmem:[#allocation2 + $0x38] sm:$0xff]
    %v51 = vld [vmem:[#allocation2 + $0x40] sm:$0xff]
    %v52 = vld [vmem:[#allocation2 + $0x48] sm:$0xff]
    %v53 = vld [vmem:[#allocation2 + $0x50] sm:$0xff]
    %v54 = vld [vmem:[#allocation2 + $0x58] sm:$0xff]
    %v55 = vld [vmem:[#allocation2 + $0x60] sm:$0xff]
    %v56 = vld [vmem:[#allocation2 + $0x68] sm:$0xff]
    %v57 = vld [vmem:[#allocation2 + $0x70] sm:$0xff]
    %v58 = vld [vmem:[#allocation2 + $0x78] sm:$0xff]
    %v59 = vld [vmem:[#allocation5] sm:$0xff]
    %v60 = vld [vmem:[#allocation5 + $0x8] sm:$0xff]
    %v61 = vld [vmem:[#allocation5 + $0x10] sm:$0xff]
    %v62 = vld [vmem:[#allocation5 + $0x18] sm:$0xff]
    %v63 = vld [vmem:[#allocation5 + $0x20] sm:$0xff]
    %v64 = vld [vmem:[#allocation5 + $0x28] sm:$0xff]
    %v65 = vld [vmem:[#allocation5 + $0x30] sm:$0xff]
    %v66 = vld [vmem:[#allocation5 + $0x38] sm:$0xff]
    %v67 = vld [vmem:[#allocation5 + $0x40] sm:$0xff]
    %v68 = vld [vmem:[#allocation5 + $0x48] sm:$0xff]
    %v69 = vld [vmem:[#allocation5 + $0x50] sm:$0xff]
    %v70 = vld [vmem:[#allocation5 + $0x58] sm:$0xff]
    %v71 = vld [vmem:[#allocation5 + $0x60] sm:$0xff]
    %v72 = vld [vmem:[#allocation5 + $0x68] sm:$0xff]
    %v73 = vld [vmem:[#allocation5 + $0x70] sm:$0xff]
    %v74 = vld [vmem:[#allocation5 + $0x78] sm:$0xff]
    %v75 = vmul.f32 %v43, %v43
    %v76 = vmul.f32 %v44, %v44
    %v77 = vmul.f32 %v45, %v45
    %v78 = vmul.f32 %v46, %v46
    %v79 = vmul.f32 %v47, %v47
    %v80 = vmul.f32 %v48, %v48
    %v81 = vmul.f32 %v49, %v49
    %v82 = vmul.f32 %v50, %v50
    %v83 = vmul.f32 %v51, %v51
    %v84 = vmul.f32 %v52, %v52
    %v85 = vmul.f32 %v53, %v53
    %v86 = vmul.f32 %v54, %v54
    %v87 = vmul.f32 %v55, %v55
    %v88 = vmul.f32 %v56, %v56
    %v89 = vmul.f32 %v57, %v57
    %v90 = vmul.f32 %v58, %v58
    %91 = vadd.xlane.f32.xlu0 %v75
    %v92 = vpop.xlane.xlu0 %91
    %93 = vadd.xlane.f32.xlu0 %v76
    %v94 = vpop.xlane.xlu0 %93
    %95 = vadd.xlane.f32.xlu0 %v77
    %v96 = vpop.xlane.xlu0 %95
    %97 = vadd.xlane.f32.xlu0 %v78
    %v98 = vpop.xlane.xlu0 %97
    %99 = vadd.xlane.f32.xlu0 %v79
    %v100 = vpop.xlane.xlu0 %99
    %101 = vadd.xlane.f32.xlu0 %v80
    %v102 = vpop.xlane.xlu0 %101
    %103 = vadd.xlane.f32.xlu0 %v81
    %v104 = vpop.xlane.xlu0 %103
    %105 = vadd.xlane.f32.xlu0 %v82
    %v106 = vpop.xlane.xlu0 %105
    %107 = vadd.xlane.f32.xlu0 %v83
    %v108 = vpop.xlane.xlu0 %107
    %109 = vadd.xlane.f32.xlu0 %v84
    %v110 = vpop.xlane.xlu0 %109
    %111 = vadd.xlane.f32.xlu0 %v85
    %v112 = vpop.xlane.xlu0 %111
    %113 = vadd.xlane.f32.xlu0 %v86
    %v114 = vpop.xlane.xlu0 %113
    %115 = vadd.xlane.f32.xlu0 %v87
    %v116 = vpop.xlane.xlu0 %115
    %117 = vadd.xlane.f32.xlu0 %v88
    %v118 = vpop.xlane.xlu0 %117
    %119 = vadd.xlane.f32.xlu0 %v89
    %v120 = vpop.xlane.xlu0 %119
    %121 = vadd.xlane.f32.xlu0 %v90
    %v122 = vpop.xlane.xlu0 %121
    %v123 = vmul.f32 %v59, %v59
    %v124 = vmul.f32 %v60, %v60
    %v125 = vmul.f32 %v61, %v61
    %v126 = vmul.f32 %v62, %v62
    %v127 = vmul.f32 %v63, %v63
    %v128 = vmul.f32 %v64, %v64
    %v129 = vmul.f32 %v65, %v65
    %v130 = vmul.f32 %v66, %v66
    %v131 = vmul.f32 %v67, %v67
    %v132 = vmul.f32 %v68, %v68
    %v133 = vmul.f32 %v69, %v69
    %v134 = vmul.f32 %v70, %v70
    %v135 = vmul.f32 %v71, %v71
    %v136 = vmul.f32 %v72, %v72
    %v137 = vmul.f32 %v73, %v73
    %v138 = vmul.f32 %v74, %v74
    %139 = vadd.xlane.f32.xlu0 %v123
    %v140 = vpop.xlane.xlu0 %139
    %141 = vadd.xlane.f32.xlu0 %v124
    %v142 = vpop.xlane.xlu0 %141
    %143 = vadd.xlane.f32.xlu0 %v125
    %v144 = vpop.xlane.xlu0 %143
    %145 = vadd.xlane.f32.xlu0 %v126
    %v146 = vpop.xlane.xlu0 %145
    %147 = vadd.xlane.f32.xlu0 %v127
    %v148 = vpop.xlane.xlu0 %147
    %149 = vadd.xlane.f32.xlu0 %v128
    %v150 = vpop.xlane.xlu0 %149
    %151 = vadd.xlane.f32.xlu0 %v129
    %v152 = vpop.xlane.xlu0 %151
    %153 = vadd.xlane.f32.xlu0 %v130
    %v154 = vpop.xlane.xlu0 %153
    %155 = vadd.xlane.f32.xlu0 %v131
    %v156 = vpop.xlane.xlu0 %155
    %157 = vadd.xlane.f32.xlu0 %v132
    %v158 = vpop.xlane.xlu0 %157
    %159 = vadd.xlane.f32.xlu0 %v133
    %v160 = vpop.xlane.xlu0 %159
    %161 = vadd.xlane.f32.xlu0 %v134
    %v162 = vpop.xlane.xlu0 %161
    %163 = vadd.xlane.f32.xlu0 %v135
    %v164 = vpop.xlane.xlu0 %163
    %165 = vadd.xlane.f32.xlu0 %v136
    %v166 = vpop.xlane.xlu0 %165
    %167 = vadd.xlane.f32.xlu0 %v137
    %v168 = vpop.xlane.xlu0 %167
    %169 = vadd.xlane.f32.xlu0 %v138
    %v170 = vpop.xlane.xlu0 %169
    %v171 = vmax.f32 %v92, 1e-10
    %v172 = vmax.f32 %v94, 1e-10
    %v173 = vmax.f32 %v96, 1e-10
    %v174 = vmax.f32 %v98, 1e-10
    %v175 = vmax.f32 %v100, 1e-10
    %v176 = vmax.f32 %v102, 1e-10
    %v177 = vmax.f32 %v104, 1e-10
    %v178 = vmax.f32 %v106, 1e-10
    %v179 = vmax.f32 %v108, 1e-10
    %v180 = vmax.f32 %v110, 1e-10
    %v181 = vmax.f32 %v112, 1e-10
    %v182 = vmax.f32 %v114, 1e-10
    %v183 = vmax.f32 %v116, 1e-10
    %v184 = vmax.f32 %v118, 1e-10
    %v185 = vmax.f32 %v120, 1e-10
    %v186 = vmax.f32 %v122, 1e-10
    %v187 = vrsqrt.pop %v171
    %v188 = vrsqrt.pop %v172
    %v189 = vrsqrt.pop %v173
    %v190 = vrsqrt.pop %v174
    %v191 = vrsqrt.pop %v175
    %v192 = vrsqrt.pop %v176
    %v193 = vrsqrt.pop %v177
    %v194 = vrsqrt.pop %v178
    %v195 = vrsqrt.pop %v179
    %v196 = vrsqrt.pop %v180
    %v197 = vrsqrt.pop %v181
    %v198 = vrsqrt.pop %v182
    %v199 = vrsqrt.pop %v183
    %v200 = vrsqrt.pop %v184
    %v201 = vrsqrt.pop %v185
    %v202 = vrsqrt.pop %v186
    %v203 = vmax.f32 %v140, 1e-10
    %v204 = vmax.f32 %v142, 1e-10
    %v205 = vmax.f32 %v144, 1e-10
    %v206 = vmax.f32 %v146, 1e-10
    %v207 = vmax.f32 %v148, 1e-10
    %v208 = vmax.f32 %v150, 1e-10
    %v209 = vmax.f32 %v152, 1e-10
    %v210 = vmax.f32 %v154, 1e-10
    %v211 = vmax.f32 %v156, 1e-10
    %v212 = vmax.f32 %v158, 1e-10
    %v213 = vmax.f32 %v160, 1e-10
    %v214 = vmax.f32 %v162, 1e-10
    %v215 = vmax.f32 %v164, 1e-10
    %v216 = vmax.f32 %v166, 1e-10
    %v217 = vmax.f32 %v168, 1e-10
    %v218 = vmax.f32 %v170, 1e-10
    %v219 = vrsqrt.pop %v203
    %v220 = vrsqrt.pop %v204
    %v221 = vrsqrt.pop %v205
    %v222 = vrsqrt.pop %v206
    %v223 = vrsqrt.pop %v207
    %v224 = vrsqrt.pop %v208
    %v225 = vrsqrt.pop %v209
    %v226 = vrsqrt.pop %v210
    %v227 = vrsqrt.pop %v211
    %v228 = vrsqrt.pop %v212
    %v229 = vrsqrt.pop %v213
    %v230 = vrsqrt.pop %v214
    %v231 = vrsqrt.pop %v215
    %v232 = vrsqrt.pop %v216
    %v233 = vrsqrt.pop %v217
    %v234 = vrsqrt.pop %v218
    %v235 = vmul.f32 %v43, %v187
    %v236 = vmul.f32 %v44, %v188
    %v237 = vmul.f32 %v45, %v189
    %v238 = vmul.f32 %v46, %v190
    %v239 = vmul.f32 %v47, %v191
    %v240 = vmul.f32 %v48, %v192
    %v241 = vmul.f32 %v49, %v193
    %v242 = vmul.f32 %v50, %v194
    %v243 = vmul.f32 %v51, %v195
    %v244 = vmul.f32 %v52, %v196
    %v245 = vmul.f32 %v53, %v197
    %v246 = vmul.f32 %v54, %v198
    %v247 = vmul.f32 %v55, %v199
    %v248 = vmul.f32 %v56, %v200
    %v249 = vmul.f32 %v57, %v201
    %v250 = vmul.f32 %v58, %v202
    %v251 = vmul.f32 %v59, %v219
    %v252 = vmul.f32 %v60, %v220
    %v253 = vmul.f32 %v61, %v221
    %v254 = vmul.f32 %v62, %v222
    %v255 = vmul.f32 %v63, %v223
    %v256 = vmul.f32 %v64, %v224
    %v257 = vmul.f32 %v65, %v225
    %v258 = vmul.f32 %v66, %v226
    %v259 = vmul.f32 %v67, %v227
    %v260 = vmul.f32 %v68, %v228
    %v261 = vmul.f32 %v69, %v229
    %v262 = vmul.f32 %v70, %v230
    %v263 = vmul.f32 %v71, %v231
    %v264 = vmul.f32 %v72, %v232
    %v265 = vmul.f32 %v73, %v233
    %v266 = vmul.f32 %v74, %v234
    %267 = vst [vmem:[#allocation7] sm:$0xff] %v235
    %268 = vst [vmem:[#allocation7 + $0x8] sm:$0xff] %v236
    %269 = vst [vmem:[#allocation7 + $0x10] sm:$0xff] %v237
    %270 = vst [vmem:[#allocation7 + $0x18] sm:$0xff] %v238
    %271 = vst [vmem:[#allocation7 + $0x20] sm:$0xff] %v239
    %272 = vst [vmem:[#allocation7 + $0x28] sm:$0xff] %v240
    %273 = vst [vmem:[#allocation7 + $0x30] sm:$0xff] %v241
    %274 = vst [vmem:[#allocation7 + $0x38] sm:$0xff] %v242
    %275 = vst [vmem:[#allocation7 + $0x40] sm:$0xff] %v243
    %276 = vst [vmem:[#allocation7 + $0x48] sm:$0xff] %v244
    %277 = vst [vmem:[#allocation7 + $0x50] sm:$0xff] %v245
    %278 = vst [vmem:[#allocation7 + $0x58] sm:$0xff] %v246
    %279 = vst [vmem:[#allocation7 + $0x60] sm:$0xff] %v247
    %280 = vst [vmem:[#allocation7 + $0x68] sm:$0xff] %v248
    %281 = vst [vmem:[#allocation7 + $0x70] sm:$0xff] %v249
    %282 = vst [vmem:[#allocation7 + $0x78] sm:$0xff] %v250
    %283 = vst [vmem:[#allocation7 + $0x80] sm:$0xff] %v251
    %284 = vst [vmem:[#allocation7 + $0x88] sm:$0xff] %v252
    %285 = vst [vmem:[#allocation7 + $0x90] sm:$0xff] %v253
    %286 = vst [vmem:[#allocation7 + $0x98] sm:$0xff] %v254
    %287 = vst [vmem:[#allocation7 + $0xa0] sm:$0xff] %v255
    %288 = vst [vmem:[#allocation7 + $0xa8] sm:$0xff] %v256
    %289 = vst [vmem:[#allocation7 + $0xb0] sm:$0xff] %v257
    %290 = vst [vmem:[#allocation7 + $0xb8] sm:$0xff] %v258
    %291 = vst [vmem:[#allocation7 + $0xc0] sm:$0xff] %v259
    %292 = vst [vmem:[#allocation7 + $0xc8] sm:$0xff] %v260
    %293 = vst [vmem:[#allocation7 + $0xd0] sm:$0xff] %v261
    %294 = vst [vmem:[#allocation7 + $0xd8] sm:$0xff] %v262
    %295 = vst [vmem:[#allocation7 + $0xe0] sm:$0xff] %v263
    %296 = vst [vmem:[#allocation7 + $0xe8] sm:$0xff] %v264
    %297 = vst [vmem:[#allocation7 + $0xf0] sm:$0xff] %v265
    %298 = vst [vmem:[#allocation7 + $0xf8] sm:$0xff] %v266
    %v299 = vmul.f32 %v235, %v251
    %v300 = vmul.f32 %v236, %v252
    %v301 = vmul.f32 %v237, %v253
    %v302 = vmul.f32 %v238, %v254
    %v303 = vmul.f32 %v239, %v255
    %v304 = vmul.f32 %v240, %v256
    %v305 = vmul.f32 %v241, %v257
    %v306 = vmul.f32 %v242, %v258
    %v307 = vmul.f32 %v243, %v259
    %v308 = vmul.f32 %v244, %v260
    %v309 = vmul.f32 %v245, %v261
    %v310 = vmul.f32 %v246, %v262
    %v311 = vmul.f32 %v247, %v263
    %v312 = vmul.f32 %v248, %v264
    %v313 = vmul.f32 %v249, %v265
    %v314 = vmul.f32 %v250, %v266
    %315 = vadd.xlane.f32.xlu0 %v299
    %v316 = vpop.xlane.xlu0 %315
    %317 = vadd.xlane.f32.xlu0 %v300
    %v318 = vpop.xlane.xlu0 %317
    %319 = vadd.xlane.f32.xlu0 %v301
    %v320 = vpop.xlane.xlu0 %319
    %321 = vadd.xlane.f32.xlu0 %v302
    %v322 = vpop.xlane.xlu0 %321
    %323 = vadd.xlane.f32.xlu0 %v303
    %v324 = vpop.xlane.xlu0 %323
    %325 = vadd.xlane.f32.xlu0 %v304
    %v326 = vpop.xlane.xlu0 %325
    %327 = vadd.xlane.f32.xlu0 %v305
    %v328 = vpop.xlane.xlu0 %327
    %329 = vadd.xlane.f32.xlu0 %v306
    %v330 = vpop.xlane.xlu0 %329
    %331 = vadd.xlane.f32.xlu0 %v307
    %v332 = vpop.xlane.xlu0 %331
    %333 = vadd.xlane.f32.xlu0 %v308
    %v334 = vpop.xlane.xlu0 %333
    %335 = vadd.xlane.f32.xlu0 %v309
    %v336 = vpop.xlane.xlu0 %335
    %337 = vadd.xlane.f32.xlu0 %v310
    %v338 = vpop.xlane.xlu0 %337
    %339 = vadd.xlane.f32.xlu0 %v311
    %v340 = vpop.xlane.xlu0 %339
    %341 = vadd.xlane.f32.xlu0 %v312
    %v342 = vpop.xlane.xlu0 %341
    %343 = vadd.xlane.f32.xlu0 %v313
    %v344 = vpop.xlane.xlu0 %343
    %345 = vadd.xlane.f32.xlu0 %v314
    %v346 = vpop.xlane.xlu0 %345
    %vm347 = vcmask 7168
    %348 = vst.msk [vmem:[%s3] sm:$0xff] %vm347, %v316
    %349 = vst.msk [vmem:[%s3 + $0x8] sm:$0xff] %vm347, %v318
    %350 = vst.msk [vmem:[%s3 + $0x10] sm:$0xff] %vm347, %v320
    %351 = vst.msk [vmem:[%s3 + $0x18] sm:$0xff] %vm347, %v322
    %352 = vst.msk [vmem:[%s3 + $0x20] sm:$0xff] %vm347, %v324
    %353 = vst.msk [vmem:[%s3 + $0x28] sm:$0xff] %vm347, %v326
    %354 = vst.msk [vmem:[%s3 + $0x30] sm:$0xff] %vm347, %v328
    %355 = vst.msk [vmem:[%s3 + $0x38] sm:$0xff] %vm347, %v330
    %356 = vst.msk [vmem:[%s3 + $0x40] sm:$0xff] %vm347, %v332
    %357 = vst.msk [vmem:[%s3 + $0x48] sm:$0xff] %vm347, %v334
    %358 = vst.msk [vmem:[%s3 + $0x50] sm:$0xff] %vm347, %v336
    %359 = vst.msk [vmem:[%s3 + $0x58] sm:$0xff] %vm347, %v338
    %360 = vst.msk [vmem:[%s3 + $0x60] sm:$0xff] %vm347, %v340
    %361 = vst.msk [vmem:[%s3 + $0x68] sm:$0xff] %vm347, %v342
    %362 = vst.msk [vmem:[%s3 + $0x70] sm:$0xff] %vm347, %v344
    %363 = vst.msk [vmem:[%s3 + $0x78] sm:$0xff] %vm347, %v346
    %364 = vst.msk [vmem:[%s3 + $0x80] sm:$0xff] %vm347, %v316
    %365 = vst.msk [vmem:[%s3 + $0x88] sm:$0xff] %vm347, %v318
    %366 = vst.msk [vmem:[%s3 + $0x90] sm:$0xff] %vm347, %v320
    %367 = vst.msk [vmem:[%s3 + $0x98] sm:$0xff] %vm347, %v322
    %368 = vst.msk [vmem:[%s3 + $0xa0] sm:$0xff] %vm347, %v324
    %369 = vst.msk [vmem:[%s3 + $0xa8] sm:$0xff] %vm347, %v326
    %370 = vst.msk [vmem:[%s3 + $0xb0] sm:$0xff] %vm347, %v328
    %371 = vst.msk [vmem:[%s3 + $0xb8] sm:$0xff] %vm347, %v330
    %372 = vst.msk [vmem:[%s3 + $0xc0] sm:$0xff] %vm347, %v332
    %373 = vst.msk [vmem:[%s3 + $0xc8] sm:$0xff] %vm347, %v334
    %374 = vst.msk [vmem:[%s3 + $0xd0] sm:$0xff] %vm347, %v336
    %375 = vst.msk [vmem:[%s3 + $0xd8] sm:$0xff] %vm347, %v338
    %376 = vst.msk [vmem:[%s3 + $0xe0] sm:$0xff] %vm347, %v340
    %377 = vst.msk [vmem:[%s3 + $0xe8] sm:$0xff] %vm347, %v342
    %378 = vst.msk [vmem:[%s3 + $0xf0] sm:$0xff] %vm347, %v344
    %379 = vst.msk [vmem:[%s3 + $0xf8] sm:$0xff] %vm347, %v346
    %v380 = vmul.f32 %v92, %v187
    %v381 = vmul.f32 %v94, %v188
    %v382 = vmul.f32 %v96, %v189
    %v383 = vmul.f32 %v98, %v190
    %v384 = vmul.f32 %v100, %v191
    %v385 = vmul.f32 %v102, %v192
    %v386 = vmul.f32 %v104, %v193
    %v387 = vmul.f32 %v106, %v194
    %v388 = vmul.f32 %v108, %v195
    %v389 = vmul.f32 %v110, %v196
    %v390 = vmul.f32 %v112, %v197
    %v391 = vmul.f32 %v114, %v198
    %v392 = vmul.f32 %v116, %v199
    %v393 = vmul.f32 %v118, %v200
    %v394 = vmul.f32 %v120, %v201
    %v395 = vmul.f32 %v122, %v202
    %v396 = vmul.f32 %v380, %v187
    %v397 = vmul.f32 %v381, %v188
    %v398 = vmul.f32 %v382, %v189
    %v399 = vmul.f32 %v383, %v190
    %v400 = vmul.f32 %v384, %v191
    %v401 = vmul.f32 %v385, %v192
    %v402 = vmul.f32 %v386, %v193
    %v403 = vmul.f32 %v387, %v194
    %v404 = vmul.f32 %v388, %v195
    %v405 = vmul.f32 %v389, %v196
    %v406 = vmul.f32 %v390, %v197
    %v407 = vmul.f32 %v391, %v198
    %v408 = vmul.f32 %v392, %v199
    %v409 = vmul.f32 %v393, %v200
    %v410 = vmul.f32 %v394, %v201
    %v411 = vmul.f32 %v395, %v202
    %412 = vst.msk [vmem:[%s4] sm:$0xff] %vm347, %v396
    %413 = vst.msk [vmem:[%s4 + $0x8] sm:$0xff] %vm347, %v397
    %414 = vst.msk [vmem:[%s4 + $0x10] sm:$0xff] %vm347, %v398
    %415 = vst.msk [vmem:[%s4 + $0x18] sm:$0xff] %vm347, %v399
    %416 = vst.msk [vmem:[%s4 + $0x20] sm:$0xff] %vm347, %v400
    %417 = vst.msk [vmem:[%s4 + $0x28] sm:$0xff] %vm347, %v401
    %418 = vst.msk [vmem:[%s4 + $0x30] sm:$0xff] %vm347, %v402
    %419 = vst.msk [vmem:[%s4 + $0x38] sm:$0xff] %vm347, %v403
    %420 = vst.msk [vmem:[%s4 + $0x40] sm:$0xff] %vm347, %v404
    %421 = vst.msk [vmem:[%s4 + $0x48] sm:$0xff] %vm347, %v405
    %422 = vst.msk [vmem:[%s4 + $0x50] sm:$0xff] %vm347, %v406
    %423 = vst.msk [vmem:[%s4 + $0x58] sm:$0xff] %vm347, %v407
    %424 = vst.msk [vmem:[%s4 + $0x60] sm:$0xff] %vm347, %v408
    %425 = vst.msk [vmem:[%s4 + $0x68] sm:$0xff] %vm347, %v409
    %426 = vst.msk [vmem:[%s4 + $0x70] sm:$0xff] %vm347, %v410
    %427 = vst.msk [vmem:[%s4 + $0x78] sm:$0xff] %vm347, %v411
    %v428 = vmul.f32 %v140, %v219
    %v429 = vmul.f32 %v142, %v220
    %v430 = vmul.f32 %v144, %v221
    %v431 = vmul.f32 %v146, %v222
    %v432 = vmul.f32 %v148, %v223
    %v433 = vmul.f32 %v150, %v224
    %v434 = vmul.f32 %v152, %v225
    %v435 = vmul.f32 %v154, %v226
    %v436 = vmul.f32 %v156, %v227
    %v437 = vmul.f32 %v158, %v228
    %v438 = vmul.f32 %v160, %v229
    %v439 = vmul.f32 %v162, %v230
    %v440 = vmul.f32 %v164, %v231
    %v441 = vmul.f32 %v166, %v232
    %v442 = vmul.f32 %v168, %v233
    %v443 = vmul.f32 %v170, %v234
    %v444 = vmul.f32 %v428, %v219
    %v445 = vmul.f32 %v429, %v220
    %v446 = vmul.f32 %v430, %v221
    %v447 = vmul.f32 %v431, %v222
    %v448 = vmul.f32 %v432, %v223
    %v449 = vmul.f32 %v433, %v224
    %v450 = vmul.f32 %v434, %v225
    %v451 = vmul.f32 %v435, %v226
    %v452 = vmul.f32 %v436, %v227
    %v453 = vmul.f32 %v437, %v228
    %v454 = vmul.f32 %v438, %v229
    %v455 = vmul.f32 %v439, %v230
    %v456 = vmul.f32 %v440, %v231
    %v457 = vmul.f32 %v441, %v232
    %v458 = vmul.f32 %v442, %v233
    %v459 = vmul.f32 %v443, %v234
    %460 = vst.msk [vmem:[%s4 + $0x80] sm:$0xff] %vm347, %v444
    %461 = vst.msk [vmem:[%s4 + $0x88] sm:$0xff] %vm347, %v445
    %462 = vst.msk [vmem:[%s4 + $0x90] sm:$0xff] %vm347, %v446
    %463 = vst.msk [vmem:[%s4 + $0x98] sm:$0xff] %vm347, %v447
    %464 = vst.msk [vmem:[%s4 + $0xa0] sm:$0xff] %vm347, %v448
    %465 = vst.msk [vmem:[%s4 + $0xa8] sm:$0xff] %vm347, %v449
    %466 = vst.msk [vmem:[%s4 + $0xb0] sm:$0xff] %vm347, %v450
    %467 = vst.msk [vmem:[%s4 + $0xb8] sm:$0xff] %vm347, %v451
    %468 = vst.msk [vmem:[%s4 + $0xc0] sm:$0xff] %vm347, %v452
    %469 = vst.msk [vmem:[%s4 + $0xc8] sm:$0xff] %vm347, %v453
    %470 = vst.msk [vmem:[%s4 + $0xd0] sm:$0xff] %vm347, %v454
    %471 = vst.msk [vmem:[%s4 + $0xd8] sm:$0xff] %vm347, %v455
    %472 = vst.msk [vmem:[%s4 + $0xe0] sm:$0xff] %vm347, %v456
    %473 = vst.msk [vmem:[%s4 + $0xe8] sm:$0xff] %vm347, %v457
    %474 = vst.msk [vmem:[%s4 + $0xf0] sm:$0xff] %vm347, %v458
    %475 = vst.msk [vmem:[%s4 + $0xf8] sm:$0xff] %vm347, %v459
    // Predicated region
    $region18: #{tpu_custom_call.1} parent=1 // pred_check
      _
    $region19: #{tpu_custom_call.1} parent=1 // pred_check_branch
      %477 = sbr.rel (0) target = $region21
    $region20: #{tpu_custom_call.1} parent=1 // pred_region
      %s479 = ssub.s32 4096, 4096
      %480 = vsyncadd [#allocation4], %s479
      %s481 = sshll.u32 [#allocation7], 4
      %s482 = int_to_ptr.vmem [resolvable:$true] %s481
      %487 = dma.vmem_to_hbm [thread:$0]  %s482, 4096, %s2, [#allocation4], 128, 128, 8
    $region21: #{tpu_custom_call.1} parent=1 // pred_fallthru
      _
    // Predicated region
    $region22: #{tpu_custom_call.1} parent=1 // pred_check
      _
    $region23: #{tpu_custom_call.1} parent=1 // pred_check_branch
      %489 = sbr.rel (0) target = $region25
    $region24: #{tpu_custom_call.1} parent=1 // pred_region
      _
    $region25: #{tpu_custom_call.1} parent=1 // pred_fallthru
      _
    // Predicated region
    $region26: #{tpu_custom_call.1} parent=1 // pred_check
      _
    $region27: #{tpu_custom_call.1} parent=1 // pred_check_branch
      %491 = sbr.rel (0) target = $region29
    $region28: #{tpu_custom_call.1} parent=1 // pred_region
      _
    $region29: #{tpu_custom_call.1} parent=1 // pred_fallthru
      _
    // Predicated region
    $region30: #{tpu_custom_call.1} parent=1 // pred_check
      _
    $region31: #{tpu_custom_call.1} parent=1 // pred_check_branch
      %493 = sbr.rel (0) target = $region33
    $region32: #{tpu_custom_call.1} parent=1 // pred_region
      %494 = dma.done [#allocation4], 4096
    $region33: #{tpu_custom_call.1} parent=1 // pred_fallthru
      _
    // Predicated region
    $region34: #{tpu_custom_call.1} parent=1 // pred_check
      _
    $region35: #{tpu_custom_call.1} parent=1 // pred_check_branch
      %496 = sbr.rel (0) target = $region37
    $region36: #{tpu_custom_call.1} parent=1 // pred_region
      _
    $region37: #{tpu_custom_call.1} parent=1 // pred_fallthru
      _
    // Predicated region
    $region38: #{tpu_custom_call.1} parent=1 // pred_check
      _
    $region39: #{tpu_custom_call.1} parent=1 // pred_check_branch
      %498 = sbr.rel (0) target = $region41
    $region40: #{tpu_custom_call.1} parent=1 // pred_region
      _
    $region41: #{tpu_custom_call.1} parent=1 // pred_fallthru
      _
    %499 = vsyncpa [#allocation3], 1
    %500 = vsyncpa [#allocation6], 1
    %501 = vsyncpa [#allocation4], 1

</llo_original>
